<compile_context>
chip_gen: v6e
topology: v6e:2x2x1
jax: 0.10.0
libtpu: 0.0.40
codegen_flags: <defaults>
</compile_context>

<pallas_src>
import math
from functools import partial

import numpy as np
import jax
import jax.numpy as jnp
from jax.experimental import pallas as pl
from jax.experimental.pallas import tpu as pltpu


def _round_up(x: int, m: int) -> int:
    return ((x + m - 1) // m) * m


def _stft_loss_kernel(fx_ref, fy_ref, basis_ref, log_ref, sq_ref, ysq_ref,
                      *, tm, k_pad, chunk):
    fx = fx_ref[...]                       # (TM, N) bf16; Hann window folded into basis
    fy = fy_ref[...]
    basis = basis_ref[...]                 # (N, 2*K_pad) bf16: [win*cos | -win*sin]

    # One MXU matmul per signal -> [real | imag] halves of the (truncated) onesided DFT.
    rx = jnp.dot(fx, basis, preferred_element_type=jnp.float32)   # (TM, 2*K_pad) f32
    ry = jnp.dot(fy, basis, preferred_element_type=jnp.float32)

    eps = jnp.float32(1e-7)                # torch: clamp(|X|, min=1e-7)

    log_acc = jnp.zeros((8, k_pad), jnp.float32)
    sq_acc = jnp.zeros((8, k_pad), jnp.float32)
    ysq_acc = jnp.zeros((8, k_pad), jnp.float32)

    def fold8(t):
        # Fold `chunk` sublanes down to 8 with vreg-aligned adds (VPU only).
        acc = t[0:8, :]
        for j in range(1, chunk // 8):
            acc = acc + t[j * 8:(j + 1) * 8, :]
        return acc

    # Streamed epilogue: per-chunk temporaries are (chunk, K_pad), never (TM, K_pad).
    # Static Python loop == full unroll; row/col slice starts are multiples of 8 / 128.
    for c in range(tm // chunk):
        r0 = c * chunk
        r1 = r0 + chunk
        xr = rx[r0:r1, :k_pad]
        xi = rx[r0:r1, k_pad:]
        yr = ry[r0:r1, :k_pad]
        yi = ry[r0:r1, k_pad:]

        x_mag = jnp.maximum(jnp.sqrt(xr * xr + xi * xi), eps)
        y_mag = jnp.maximum(jnp.sqrt(yr * yr + yi * yi), eps)

        diff = y_mag - x_mag
        log_acc = log_acc + fold8(jnp.abs(jnp.log(y_mag) - jnp.log(x_mag)))
        sq_acc = sq_acc + fold8(diff * diff)
        ysq_acc = ysq_acc + fold8(y_mag * y_mag)

    log_ref[...] = log_acc
    sq_ref[...] = sq_acc
    ysq_ref[...] = ysq_acc


def _build_basis(fft_size: int, win_length: int, k_pad: int):
    """Host-side float64 basis; phase n*k reduced mod fft_size in exact integers."""
    k_in = fft_size // 2
    n = np.arange(fft_size, dtype=np.int64)[:, None]
    k = np.arange(k_pad, dtype=np.int64)[None, :]
    ang = (2.0 * np.pi / fft_size) * ((n * k) % fft_size).astype(np.float64)
    col_valid = (np.arange(k_pad) < k_in)[None, :]
    cos_mat = np.where(col_valid, np.cos(ang), 0.0)
    msin_mat = np.where(col_valid, -np.sin(ang), 0.0)

    # torch.hann_window(win_length), periodic=True; centered zero-pad to fft_size.
    wn = np.arange(win_length, dtype=np.float64)
    win = 0.5 - 0.5 * np.cos(2.0 * np.pi * wn / win_length)
    win_full = np.zeros(fft_size, np.float64)
    left = (fft_size - win_length) // 2
    win_full[left:left + win_length] = win

    basis = np.concatenate([win_full[:, None] * cos_mat,
                            win_full[:, None] * msin_mat], axis=1)   # (N, 2*K_pad)
    nyq = win_full * np.where(np.arange(fft_size) % 2 == 0, 1.0, -1.0)  # k = N/2 row
    return np.asarray(basis, dtype=np.float32), np.asarray(nyq, dtype=np.float32)


def _make_frames(x: jnp.ndarray, fft_size: int, hop_size: int) -> jnp.ndarray:
    """torch.stft framing, center=True, pad_mode='reflect'. x: (B, T) -> (B*F, fft_size)."""
    B, T = x.shape
    pad = fft_size // 2
    x_pad = jnp.pad(x, ((0, 0), (pad, pad)), mode="reflect")
    n_frames = 1 + T // hop_size
    idx = jnp.arange(n_frames)[:, None] * hop_size + jnp.arange(fft_size)[None, :]
    frames = x_pad[:, idx]                       # (B, F, fft_size)
    return frames.reshape(B * n_frames, fft_size)


def stft_loss(x, y, fft_size=1024, shift_size=120, win_length=600):
    """Returns (sc_loss, mag_loss) matching STFTLoss.forward for x, y of shape (B, T)."""
    assert fft_size % 2 == 0, "even fft_size required (onesided real DFT split)"
    x = x.astype(jnp.float32)
    y = y.astype(jnp.float32)

    N = fft_size
    K = N // 2 + 1                 # onesided bins (incl. DC and Nyquist)
    K_in = N // 2                  # bins computed in-kernel (k = 0 .. N/2 - 1)
    K_pad = _round_up(K_in, 128)   # lane-dense (no padding for fft_size 256 / 1024)
    K2 = 2 * K_pad

    basis_np, nyq_np = _build_basis(N, win_length, K_pad)
    basis = jnp.asarray(basis_np, dtype=jnp.bfloat16)     # MXU operand
    nyq_vec = jnp.asarray(nyq_np, dtype=jnp.float32)

    frames_x = _make_frames(x, N, shift_size)              # (M, N) f32
    frames_y = _make_frames(y, N, shift_size)
    M = frames_x.shape[0]

    # Nyquist-bin (k = N/2) contributions computed in f32 in the wrapper.
    eps = jnp.float32(1e-7)
    x_nyq = jnp.maximum(jnp.abs(frames_x @ nyq_vec), eps)  # (M,)
    y_nyq = jnp.maximum(jnp.abs(frames_y @ nyq_vec), eps)
    nyq_log = jnp.sum(jnp.abs(jnp.log(y_nyq) - jnp.log(x_nyq)))
    nyq_sq = jnp.sum((y_nyq - x_nyq) ** 2)
    nyq_ysq = jnp.sum(y_nyq * y_nyq)

    # Frame-tile size: multiple of 8 sublanes; up to 512 rows (fits v7x 64 MiB with the
    # bf16 basis + streamed epilogue); for moderate M use exactly two blocks so the
    # "parallel" grid axis keeps both v7x TensorCores busy.
    TM_CAP = 512
    if M <= 16:
        TM = _round_up(M, 8)
    elif M <= 2 * TM_CAP:
        TM = _round_up((M + 1) // 2, 8)
    else:
        TM = TM_CAP
    num_blocks = -(-M // TM)
    M_pad = num_blocks * TM

    CHUNK = 8
    for c in (64, 32, 16, 8):
        if TM % c == 0:
            CHUNK = c
            break

    if M_pad > M:
        frames_x = jnp.pad(frames_x, ((0, M_pad - M), (0, 0)))
        frames_y = jnp.pad(frames_y, ((0, M_pad - M), (0, 0)))
    fx_bf = frames_x.astype(jnp.bfloat16)
    fy_bf = frames_y.astype(jnp.bfloat16)

    kernel = partial(_stft_loss_kernel, tm=TM, k_pad=K_pad, chunk=CHUNK)

    frame_spec = pl.BlockSpec((TM, N), lambda i: (i, 0))
    # Constant index_map -> Pallas DMAs the basis once; see header note on Buffered(1).
    basis_spec = pl.BlockSpec((N, K2), lambda i: (0, 0))
    out_spec = pl.BlockSpec((8, K_pad), lambda i: (i, 0))
    out_shape = [jax.ShapeDtypeStruct((num_blocks * 8, K_pad), jnp.float32)] * 3

    # Advisory cost estimate for XLA scheduling.
    flops = 2 * 2 * M_pad * N * K2
    transcendentals = 4 * M_pad * K_pad          # 2 sqrt + 2 log per bin
    bytes_accessed = 2 * (2 * M_pad * N + N * K2) + 4 * (3 * num_blocks * 8 * K_pad)

    # VMEM budget (bytes): per-buffer sum + 50% headroom, capped below v7x's 64 MiB.
    bf16_b, f32_b = 2, 4
    vmem_est = (
        2 * N * K2 * bf16_b            # basis (constant block, still double-buffered)
        + 2 * 2 * TM * N * bf16_b      # two frame inputs, double-buffered
        + 2 * TM * K2 * f32_b          # rx / ry f32 matmul results
        + 10 * CHUNK * K_pad * f32_b   # streamed-epilogue chunk temporaries
        + 3 * 2 * 8 * K_pad * f32_b    # three partial-sum outputs, double-buffered
    )
    vmem_limit = int(min(max(int(vmem_est * 1.5), 32 * 1024 * 1024),
                         56 * 1024 * 1024))

    partials = pl.pallas_call(
        kernel,
        out_shape=out_shape,
        grid=(num_blocks,),
        in_specs=[frame_spec, frame_spec, basis_spec],
        out_specs=[out_spec, out_spec, out_spec],
        compiler_params=pltpu.CompilerParams(
            dimension_semantics=("parallel",),
            vmem_limit_bytes=vmem_limit),
        cost_estimate=pl.CostEstimate(
            flops=flops, transcendentals=transcendentals,
            bytes_accessed=bytes_accessed),
    )(fx_bf, fy_bf, basis)

    sum_abs_logdiff = jnp.sum(partials[0]) + nyq_log
    sum_sq_diff = jnp.sum(partials[1]) + nyq_sq
    # Padded rows/columns contribute exactly eps^2 each to ||Y||^2 (both mags clamp to
    # eps there; their log / diff terms are exactly zero) -> subtract that leak.
    spurious = jnp.float32(M_pad * K_pad - M * K_in) * (eps * eps)
    sum_sq_y = jnp.sum(partials[2]) - spurious + nyq_ysq

    sc_loss = jnp.sqrt(sum_sq_diff) / jnp.sqrt(sum_sq_y)   # ||Y-X||_F / ||Y||_F
    mag_loss = sum_abs_logdiff / (M * K)                   # L1 mean over (B, frames, bins)
    return sc_loss, mag_loss


if __name__ == "__main__":
    # Small but module-consistent configuration (STFT params are __init__ args).
    B, T = 2, 1024
    fft_size, shift_size, win_length = 256, 64, 160

    key = jax.random.PRNGKey(0)
    kx, ky = jax.random.split(key)
    x = jax.random.normal(kx, (B, T), dtype=jnp.float32)
    y = jax.random.normal(ky, (B, T), dtype=jnp.float32)

    sc_loss, mag_loss = jax.jit(
        lambda a, b: stft_loss(a, b, fft_size, shift_size, win_length)
    )(x, y)
    jax.block_until_ready((sc_loss, mag_loss))
    assert jnp.isfinite(sc_loss) and jnp.isfinite(mag_loss)
    print("KERNEL_OK")
</pallas_src>

<mosaic_0001>
module attributes {stable_mosaic.version = 11 : i64} {
  func.func @_stft_loss_kernel(%arg0: i32, %arg1: memref<24x256xbf16, #tpu.memory_space<vmem>>, %arg2: memref<24x256xbf16, #tpu.memory_space<vmem>>, %arg3: memref<256x256xbf16, #tpu.memory_space<vmem>>, %arg4: memref<8x128xf32, #tpu.memory_space<vmem>>, %arg5: memref<8x128xf32, #tpu.memory_space<vmem>>, %arg6: memref<8x128xf32, #tpu.memory_space<vmem>>) attributes {dimension_semantics = [#tpu.dimension_semantics<parallel>], iteration_bounds = array<i64: 2>, scalar_prefetch = 0 : i64, scratch_operands = 0 : i64, tpu.core_type = #tpu.core_type<tc>, window_params = [{transform_indices = @transform_0, window_bounds = array<i64: 24, 256>}, {transform_indices = @transform_1, window_bounds = array<i64: 24, 256>}, {pipeline_mode = #tpu.pipeline_mode<synchronous>, transform_indices = @transform_2, window_bounds = array<i64: 256, 256>}, {transform_indices = @transform_3, window_bounds = array<i64: 8, 128>}, {transform_indices = @transform_4, window_bounds = array<i64: 8, 128>}, {transform_indices = @transform_5, window_bounds = array<i64: 8, 128>}]} {
    %c0 = arith.constant 0 : index
    %c0_0 = arith.constant 0 : index
    %0 = vector.load %arg1[%c0, %c0_0] : memref<24x256xbf16, #tpu.memory_space<vmem>>, vector<24x256xbf16>
    %c0_1 = arith.constant 0 : index
    %c0_2 = arith.constant 0 : index
    %1 = vector.load %arg2[%c0_1, %c0_2] : memref<24x256xbf16, #tpu.memory_space<vmem>>, vector<24x256xbf16>
    %c0_3 = arith.constant 0 : index
    %c0_4 = arith.constant 0 : index
    %2 = vector.load %arg3[%c0_3, %c0_4] : memref<256x256xbf16, #tpu.memory_space<vmem>>, vector<256x256xbf16>
    %cst = arith.constant dense<0.000000e+00> : vector<24x256xf32>
    %3 = tpu.matmul %0, %2, %cst {dimension_numbers = #tpu.dot_dimension_numbers<[1], [0], [0], [1], [0, 0, 1, 1], [], []>} : vector<24x256xbf16>, vector<256x256xbf16>, vector<24x256xf32> -> vector<24x256xf32>
    %cst_5 = arith.constant dense<0.000000e+00> : vector<24x256xf32>
    %4 = tpu.matmul %1, %2, %cst_5 {dimension_numbers = #tpu.dot_dimension_numbers<[1], [0], [0], [1], [0, 0, 1, 1], [], []>} : vector<24x256xbf16>, vector<256x256xbf16>, vector<24x256xf32> -> vector<24x256xf32>
    %cst_6 = arith.constant 0.000000e+00 : f32
    %5 = vector.broadcast %cst_6 : f32 to vector<8x128xf32>
    %cst_7 = arith.constant 0.000000e+00 : f32
    %6 = vector.broadcast %cst_7 : f32 to vector<8x128xf32>
    %cst_8 = arith.constant 0.000000e+00 : f32
    %7 = vector.broadcast %cst_8 : f32 to vector<8x128xf32>
    %8 = vector.extract_strided_slice %3 {offsets = [0, 0], sizes = [8, 128], strides = [1, 1]} : vector<24x256xf32> to vector<8x128xf32>
    %9 = vector.extract_strided_slice %3 {offsets = [0, 128], sizes = [8, 128], strides = [1, 1]} : vector<24x256xf32> to vector<8x128xf32>
    %10 = vector.extract_strided_slice %4 {offsets = [0, 0], sizes = [8, 128], strides = [1, 1]} : vector<24x256xf32> to vector<8x128xf32>
    %11 = vector.extract_strided_slice %4 {offsets = [0, 128], sizes = [8, 128], strides = [1, 1]} : vector<24x256xf32> to vector<8x128xf32>
    %12 = arith.mulf %8, %8 : vector<8x128xf32>
    %13 = arith.mulf %9, %9 : vector<8x128xf32>
    %14 = arith.addf %12, %13 : vector<8x128xf32>
    %15 = math.sqrt %14 : vector<8x128xf32>
    %cst_9 = arith.constant 1.000000e-07 : f32
    %16 = vector.broadcast %cst_9 : f32 to vector<8x128xf32>
    %17 = arith.maximumf %15, %16 : vector<8x128xf32>
    %18 = arith.mulf %10, %10 : vector<8x128xf32>
    %19 = arith.mulf %11, %11 : vector<8x128xf32>
    %20 = arith.addf %18, %19 : vector<8x128xf32>
    %21 = math.sqrt %20 : vector<8x128xf32>
    %cst_10 = arith.constant 1.000000e-07 : f32
    %22 = vector.broadcast %cst_10 : f32 to vector<8x128xf32>
    %23 = arith.maximumf %21, %22 : vector<8x128xf32>
    %24 = arith.subf %23, %17 : vector<8x128xf32>
    %25 = math.log %23 : vector<8x128xf32>
    %26 = math.log %17 : vector<8x128xf32>
    %27 = arith.subf %25, %26 : vector<8x128xf32>
    %28 = math.absf %27 : vector<8x128xf32>
    %29 = arith.addf %5, %28 : vector<8x128xf32>
    %30 = arith.mulf %24, %24 : vector<8x128xf32>
    %31 = arith.addf %6, %30 : vector<8x128xf32>
    %32 = arith.mulf %23, %23 : vector<8x128xf32>
    %33 = arith.addf %7, %32 : vector<8x128xf32>
    %34 = vector.extract_strided_slice %3 {offsets = [8, 0], sizes = [8, 128], strides = [1, 1]} : vector<24x256xf32> to vector<8x128xf32>
    %35 = vector.extract_strided_slice %3 {offsets = [8, 128], sizes = [8, 128], strides = [1, 1]} : vector<24x256xf32> to vector<8x128xf32>
    %36 = vector.extract_strided_slice %4 {offsets = [8, 0], sizes = [8, 128], strides = [1, 1]} : vector<24x256xf32> to vector<8x128xf32>
    %37 = vector.extract_strided_slice %4 {offsets = [8, 128], sizes = [8, 128], strides = [1, 1]} : vector<24x256xf32> to vector<8x128xf32>
    %38 = arith.mulf %34, %34 : vector<8x128xf32>
    %39 = arith.mulf %35, %35 : vector<8x128xf32>
    %40 = arith.addf %38, %39 : vector<8x128xf32>
    %41 = math.sqrt %40 : vector<8x128xf32>
    %cst_11 = arith.constant 1.000000e-07 : f32
    %42 = vector.broadcast %cst_11 : f32 to vector<8x128xf32>
    %43 = arith.maximumf %41, %42 : vector<8x128xf32>
    %44 = arith.mulf %36, %36 : vector<8x128xf32>
    %45 = arith.mulf %37, %37 : vector<8x128xf32>
    %46 = arith.addf %44, %45 : vector<8x128xf32>
    %47 = math.sqrt %46 : vector<8x128xf32>
    %cst_12 = arith.constant 1.000000e-07 : f32
    %48 = vector.broadcast %cst_12 : f32 to vector<8x128xf32>
    %49 = arith.maximumf %47, %48 : vector<8x128xf32>
    %50 = arith.subf %49, %43 : vector<8x128xf32>
    %51 = math.log %49 : vector<8x128xf32>
    %52 = math.log %43 : vector<8x128xf32>
    %53 = arith.subf %51, %52 : vector<8x128xf32>
    %54 = math.absf %53 : vector<8x128xf32>
    %55 = arith.addf %29, %54 : vector<8x128xf32>
    %56 = arith.mulf %50, %50 : vector<8x128xf32>
    %57 = arith.addf %31, %56 : vector<8x128xf32>
    %58 = arith.mulf %49, %49 : vector<8x128xf32>
    %59 = arith.addf %33, %58 : vector<8x128xf32>
    %60 = vector.extract_strided_slice %3 {offsets = [16, 0], sizes = [8, 128], strides = [1, 1]} : vector<24x256xf32> to vector<8x128xf32>
    %61 = vector.extract_strided_slice %3 {offsets = [16, 128], sizes = [8, 128], strides = [1, 1]} : vector<24x256xf32> to vector<8x128xf32>
    %62 = vector.extract_strided_slice %4 {offsets = [16, 0], sizes = [8, 128], strides = [1, 1]} : vector<24x256xf32> to vector<8x128xf32>
    %63 = vector.extract_strided_slice %4 {offsets = [16, 128], sizes = [8, 128], strides = [1, 1]} : vector<24x256xf32> to vector<8x128xf32>
    %64 = arith.mulf %60, %60 : vector<8x128xf32>
    %65 = arith.mulf %61, %61 : vector<8x128xf32>
    %66 = arith.addf %64, %65 : vector<8x128xf32>
    %67 = math.sqrt %66 : vector<8x128xf32>
    %cst_13 = arith.constant 1.000000e-07 : f32
    %68 = vector.broadcast %cst_13 : f32 to vector<8x128xf32>
    %69 = arith.maximumf %67, %68 : vector<8x128xf32>
    %70 = arith.mulf %62, %62 : vector<8x128xf32>
    %71 = arith.mulf %63, %63 : vector<8x128xf32>
    %72 = arith.addf %70, %71 : vector<8x128xf32>
    %73 = math.sqrt %72 : vector<8x128xf32>
    %cst_14 = arith.constant 1.000000e-07 : f32
    %74 = vector.broadcast %cst_14 : f32 to vector<8x128xf32>
    %75 = arith.maximumf %73, %74 : vector<8x128xf32>
    %76 = arith.subf %75, %69 : vector<8x128xf32>
    %77 = math.log %75 : vector<8x128xf32>
    %78 = math.log %69 : vector<8x128xf32>
    %79 = arith.subf %77, %78 : vector<8x128xf32>
    %80 = math.absf %79 : vector<8x128xf32>
    %81 = arith.addf %55, %80 : vector<8x128xf32>
    %82 = arith.mulf %76, %76 : vector<8x128xf32>
    %83 = arith.addf %57, %82 : vector<8x128xf32>
    %84 = arith.mulf %75, %75 : vector<8x128xf32>
    %85 = arith.addf %59, %84 : vector<8x128xf32>
    %c0_15 = arith.constant 0 : index
    %c0_16 = arith.constant 0 : index
    %86 = vector.load %arg4[%c0_15, %c0_16] : memref<8x128xf32, #tpu.memory_space<vmem>>, vector<8x128xf32>
    tpu.vector_store %arg4[%c0_15, %c0_16], %81 {strides = array<i32>} : memref<8x128xf32, #tpu.memory_space<vmem>>, vector<8x128xf32>,
    %c0_17 = arith.constant 0 : index
    %c0_18 = arith.constant 0 : index
    %87 = vector.load %arg5[%c0_17, %c0_18] : memref<8x128xf32, #tpu.memory_space<vmem>>, vector<8x128xf32>
    tpu.vector_store %arg5[%c0_17, %c0_18], %83 {strides = array<i32>} : memref<8x128xf32, #tpu.memory_space<vmem>>, vector<8x128xf32>,
    %c0_19 = arith.constant 0 : index
    %c0_20 = arith.constant 0 : index
    %88 = vector.load %arg6[%c0_19, %c0_20] : memref<8x128xf32, #tpu.memory_space<vmem>>, vector<8x128xf32>
    tpu.vector_store %arg6[%c0_19, %c0_20], %85 {strides = array<i32>} : memref<8x128xf32, #tpu.memory_space<vmem>>, vector<8x128xf32>,
    return
  }
  func.func @transform_0(%arg0: i32) -> (i32, i32) {
    %c0_i32 = arith.constant 0 : i32
    %c0_i32_0 = arith.constant 0 : i32
    return %arg0, %c0_i32 : i32, i32
  }
  func.func @transform_1(%arg0: i32) -> (i32, i32) {
    %c0_i32 = arith.constant 0 : i32
    %c0_i32_0 = arith.constant 0 : i32
    return %arg0, %c0_i32 : i32, i32
  }
  func.func @transform_2(%arg0: i32) -> (i32, i32) {
    %c0_i32 = arith.constant 0 : i32
    %c0_i32_0 = arith.constant 0 : i32
    %c0_i32_1 = arith.constant 0 : i32
    return %c0_i32, %c0_i32_0 : i32, i32
  }
  func.func @transform_3(%arg0: i32) -> (i32, i32) {
    %c0_i32 = arith.constant 0 : i32
    %c0_i32_0 = arith.constant 0 : i32
    return %arg0, %c0_i32 : i32, i32
  }
  func.func @transform_4(%arg0: i32) -> (i32, i32) {
    %c0_i32 = arith.constant 0 : i32
    %c0_i32_0 = arith.constant 0 : i32
    return %arg0, %c0_i32 : i32, i32
  }
  func.func @transform_5(%arg0: i32) -> (i32, i32) {
    %c0_i32 = arith.constant 0 : i32
    %c0_i32_0 = arith.constant 0 : i32
    return %arg0, %c0_i32 : i32, i32
  }
}

</mosaic_0001>

<llo_original>
// kernel: _lambda_.1
$region0: #{_lambda_.1}
  #allocation0 [shape = 'u32[]', space=smem, size = 0x4, offset = 0x4, fixed_abs, tag = 'smem constant byte address 0x4 - core index']
  #allocation1 [shape = 'u32[144,128]{1,0:T(1,128)}', space=vmem, size = 0x12000, scoped, tag = 'internal scratch']
  %s0 = inlined_call_operand.vmem [shape: bf16[48,256], index: 0, kind: input, shape index: {}]
  %s1 = inlined_call_operand.vmem [shape: bf16[48,256], index: 1, kind: input, shape index: {}]
  %s2 = inlined_call_operand.vmem [shape: bf16[256,256], index: 2, kind: input, shape index: {}]
  %s3 = inlined_call_operand.vmem [shape: f32[16,128], index: 3, kind: output, shape index: {0}]
  %s4 = inlined_call_operand.vmem [shape: f32[16,128], index: 4, kind: output, shape index: {1}]
  %s5 = inlined_call_operand.vmem [shape: f32[16,128], index: 5, kind: output, shape index: {2}]
  %6 = xla_tuple %s3, %s4, %s5
  %s7 = sld [smem:[#allocation0]]
  $region61: #{_lambda_.1} parent=0
    _
  %s9 = ssub.s32 1, %s7
  %s10 = scalar_select 0, %s9, %s7
  loop: start=0, step=1, limit=4
  $region2: #{_lambda_.1} parent=0 // loop_pre_header
    _
  $region3: #{_lambda_.1} parent=0 // loop_header
    %s12 = sphi 0, %s16
    %p13 = scmp.ge.s32.totalorder %s12, 4
    %s22 = sphi 0, %s24
    %s25 = sphi 0, %s22
    %s26 = sphi 0, %s25
    %s42 = sphi 0, %s26
    %s48 = sphi 0, %s50
    %s51 = sphi 0, %s48
    %s52 = sphi 0, %s51
    %s68 = sphi 0, %s52
    %s72 = sphi 0, %s72
    %s74 = sphi 0, %s72
    %s75 = sphi 0, %s74
    %s89 = sphi 0, %s75
    %s95 = sphi 0, %s97
    %s98 = sphi 0, %s95
    %s99 = sphi 0, %s98
    %s115 = sphi 0, %s99
    %s121 = sphi 0, %s123
    %s124 = sphi 0, %s121
    %s125 = sphi 0, %s124
    %s141 = sphi 0, %s125
    %s147 = sphi 0, %s149
    %s150 = sphi 0, %s147
    %s151 = sphi 0, %s150
    %s167 = sphi 0, %s151
  $region4: #{_lambda_.1} parent=0 // loop_header_branch
    %15 = sbr.rel (%p13) target = $region8
  $region5: #{_lambda_.1} parent=0 // loop_body
    %s17 = ssub.s32 %s12, 1
    %s18 = ssub.s32 %s12, 2
    %s19 = sadd.s32 %s12, 1
    %s20 = ssub.s32 %s12, %s19
    %p21 = scmp.eq.s32.totalorder %s20, 0
    %s23 = sadd.s32 %s22, 1
    %s24 = scalar_select %p21, %s22, %s23
    %p27 = pneg %p21
    %p28 = scmp.eq.s32.totalorder %s12, 1
    %p29 = por %p27, %p28
    %p30 = scmp.ne.s32.totalorder %s22, %s25
    %p31 = scmp.eq.s32.totalorder %s12, 0
    %p32 = por %p30, %p31
    %p33 = scmp.ne.s32.totalorder %s22, %s25
    %p34 = scmp.eq.s32.totalorder %s17, 1
    %p35 = por %p33, %p34
    %p36 = scmp.ne.s32.totalorder %s25, %s26
    %p37 = scmp.eq.s32.totalorder %s17, 0
    %p38 = por %p36, %p37
    %p39 = scmp.ne.s32.totalorder %s25, %s26
    %p40 = scmp.eq.s32.totalorder %s18, 1
    %p41 = por %p39, %p40
    %p43 = scmp.ne.s32.totalorder %s26, %s42
    %p44 = scmp.eq.s32.totalorder %s18, 0
    %p45 = por %p43, %p44
    %s46 = ssub.s32 %s12, %s19
    %p47 = scmp.eq.s32.totalorder %s46, 0
    %s49 = sadd.s32 %s48, 1
    %s50 = scalar_select %p47, %s48, %s49
    %p53 = pneg %p47
    %p54 = scmp.eq.s32.totalorder %s12, 1
    %p55 = por %p53, %p54
    %p56 = scmp.ne.s32.totalorder %s48, %s51
    %p57 = scmp.eq.s32.totalorder %s12, 0
    %p58 = por %p56, %p57
    %p59 = scmp.ne.s32.totalorder %s48, %s51
    %p60 = scmp.eq.s32.totalorder %s17, 1
    %p61 = por %p59, %p60
    %p62 = scmp.ne.s32.totalorder %s51, %s52
    %p63 = scmp.eq.s32.totalorder %s17, 0
    %p64 = por %p62, %p63
    %p65 = scmp.ne.s32.totalorder %s51, %s52
    %p66 = scmp.eq.s32.totalorder %s18, 1
    %p67 = por %p65, %p66
    %p69 = scmp.ne.s32.totalorder %s52, %s68
    %p70 = scmp.eq.s32.totalorder %s18, 0
    %p71 = por %p69, %p70
    %s73 = sadd.s32 %s72, 1
    %p76 = scmp.eq.s32.totalorder %s12, 1
    %p77 = scmp.ne.s32.totalorder %s72, %s74
    %p78 = scmp.eq.s32.totalorder %s12, 0
    %p79 = por %p77, %p78
    %p80 = scmp.ne.s32.totalorder %s72, %s74
    %p81 = scmp.eq.s32.totalorder %s17, 1
    %p82 = por %p80, %p81
    %p83 = scmp.ne.s32.totalorder %s74, %s75
    %p84 = scmp.eq.s32.totalorder %s17, 0
    %p85 = por %p83, %p84
    %p86 = scmp.ne.s32.totalorder %s74, %s75
    %p87 = scmp.eq.s32.totalorder %s18, 1
    %p88 = por %p86, %p87
    %p90 = scmp.ne.s32.totalorder %s75, %s89
    %p91 = scmp.eq.s32.totalorder %s18, 0
    %p92 = por %p90, %p91
    %s93 = ssub.s32 %s12, %s19
    %p94 = scmp.eq.s32.totalorder %s93, 0
    %s96 = sadd.s32 %s95, 1
    %s97 = scalar_select %p94, %s95, %s96
    %p100 = pneg %p94
    %p101 = scmp.eq.s32.totalorder %s12, 1
    %p102 = por %p100, %p101
    %p103 = scmp.ne.s32.totalorder %s95, %s98
    %p104 = scmp.eq.s32.totalorder %s12, 0
    %p105 = por %p103, %p104
    %p106 = scmp.ne.s32.totalorder %s95, %s98
    %p107 = scmp.eq.s32.totalorder %s17, 1
    %p108 = por %p106, %p107
    %p109 = scmp.ne.s32.totalorder %s98, %s99
    %p110 = scmp.eq.s32.totalorder %s17, 0
    %p111 = por %p109, %p110
    %p112 = scmp.ne.s32.totalorder %s98, %s99
    %p113 = scmp.eq.s32.totalorder %s18, 1
    %p114 = por %p112, %p113
    %p116 = scmp.ne.s32.totalorder %s99, %s115
    %p117 = scmp.eq.s32.totalorder %s18, 0
    %p118 = por %p116, %p117
    %s119 = ssub.s32 %s12, %s19
    %p120 = scmp.eq.s32.totalorder %s119, 0
    %s122 = sadd.s32 %s121, 1
    %s123 = scalar_select %p120, %s121, %s122
    %p126 = pneg %p120
    %p127 = scmp.eq.s32.totalorder %s12, 1
    %p128 = por %p126, %p127
    %p129 = scmp.ne.s32.totalorder %s121, %s124
    %p130 = scmp.eq.s32.totalorder %s12, 0
    %p131 = por %p129, %p130
    %p132 = scmp.ne.s32.totalorder %s121, %s124
    %p133 = scmp.eq.s32.totalorder %s17, 1
    %p134 = por %p132, %p133
    %p135 = scmp.ne.s32.totalorder %s124, %s125
    %p136 = scmp.eq.s32.totalorder %s17, 0
    %p137 = por %p135, %p136
    %p138 = scmp.ne.s32.totalorder %s124, %s125
    %p139 = scmp.eq.s32.totalorder %s18, 1
    %p140 = por %p138, %p139
    %p142 = scmp.ne.s32.totalorder %s125, %s141
    %p143 = scmp.eq.s32.totalorder %s18, 0
    %p144 = por %p142, %p143
    %s145 = ssub.s32 %s12, %s19
    %p146 = scmp.eq.s32.totalorder %s145, 0
    %s148 = sadd.s32 %s147, 1
    %s149 = scalar_select %p146, %s147, %s148
    %p152 = pneg %p146
    %p153 = scmp.eq.s32.totalorder %s12, 1
    %p154 = por %p152, %p153
    %p155 = scmp.ne.s32.totalorder %s147, %s150
    %p156 = scmp.eq.s32.totalorder %s12, 0
    %p157 = por %p155, %p156
    %p158 = scmp.ne.s32.totalorder %s147, %s150
    %p159 = scmp.eq.s32.totalorder %s17, 1
    %p160 = por %p158, %p159
    %p161 = scmp.ne.s32.totalorder %s150, %s151
    %p162 = scmp.eq.s32.totalorder %s17, 0
    %p163 = por %p161, %p162
    %p164 = scmp.ne.s32.totalorder %s150, %s151
    %p165 = scmp.eq.s32.totalorder %s18, 1
    %p166 = por %p164, %p165
    %p168 = scmp.ne.s32.totalorder %s151, %s167
    %p169 = scmp.eq.s32.totalorder %s18, 0
    %p170 = por %p168, %p169
    %p171 = scmp.le.s32.totalorder 1, %s12
    %p172 = scmp.lt.s32.totalorder %s12, 3
    %p173 = pnand %p171, %p172
    %p174 = pneg %p173
    // Predicated region
    $region9: #{_lambda_.1} parent=5 // pred_check
      _
    $region10: #{_lambda_.1} parent=5 // pred_check_branch
      %176 = sbr.rel (%p173) target = $region12
    $region11: #{_lambda_.1} parent=5 // pred_region
      %s177 = ssub.s32 %s12, 1
      // Predicated region
      $region13: #{_lambda_.1} parent=11 // pred_check
        %p178 = pneg %p85
      $region14: #{_lambda_.1} parent=11 // pred_check_branch
        %180 = sbr.rel (%p178) target = $region16
      $region15: #{_lambda_.1} parent=11 // pred_region
        _
      $region16: #{_lambda_.1} parent=11 // pred_fallthru
        _
    $region12: #{_lambda_.1} parent=5 // pred_fallthru
      _
    %p181 = scmp.lt.s32.totalorder %s12, 2
    // Predicated region
    $region17: #{_lambda_.1} parent=5 // pred_check
      %p182 = pneg %p181
    $region18: #{_lambda_.1} parent=5 // pred_check_branch
      %184 = sbr.rel (%p182) target = $region20
    $region19: #{_lambda_.1} parent=5 // pred_region
      // Predicated region
      $region21: #{_lambda_.1} parent=19 // pred_check
        %p185 = pneg %p32
      $region22: #{_lambda_.1} parent=19 // pred_check_branch
        %187 = sbr.rel (%p185) target = $region24
      $region23: #{_lambda_.1} parent=19 // pred_region
        %s188 = smul.u32 3, %s12
        %p189 = scmp.lt.s32.totalorder %s188, 5
        %s190 = scalar_select %p189, %s188, 5
        %s191 = smul.addr %s190, 2
        %s192 = smul.addr %s191, 4
        %s193 = scalar_lea.vmem %s0, %s192
        %s194 = smul.u32 3, %s12
      $region24: #{_lambda_.1} parent=19 // pred_fallthru
        _
      // Predicated region
      $region25: #{_lambda_.1} parent=19 // pred_check
        %p195 = pneg %p58
      $region26: #{_lambda_.1} parent=19 // pred_check_branch
        %197 = sbr.rel (%p195) target = $region28
      $region27: #{_lambda_.1} parent=19 // pred_region
        %s198 = smul.u32 3, %s12
        %p199 = scmp.lt.s32.totalorder %s198, 5
        %s200 = scalar_select %p199, %s198, 5
        %s201 = smul.addr %s200, 2
        %s202 = smul.addr %s201, 4
        %s203 = scalar_lea.vmem %s1, %s202
        %s204 = smul.u32 3, %s12
      $region28: #{_lambda_.1} parent=19 // pred_fallthru
        _
    $region20: #{_lambda_.1} parent=5 // pred_fallthru
      _
    %p205 = scmp.le.s32.totalorder 1, %s12
    %p206 = scmp.lt.s32.totalorder %s12, 3
    %p207 = pnand %p205, %p206
    %p208 = pneg %p207
    // Predicated region
    $region29: #{_lambda_.1} parent=5 // pred_check
      _
    $region30: #{_lambda_.1} parent=5 // pred_check_branch
      %210 = sbr.rel (%p207) target = $region32
    $region31: #{_lambda_.1} parent=5 // pred_region
      %s211 = ssub.s32 %s12, 1
      %s212 = smul.u32 3, %s17
      %p213 = scmp.lt.s32.totalorder %s212, 5
      %s214 = scalar_select %p213, %s212, 5
      %s215 = smul.addr %s214, 2
      %s216 = smul.addr %s215, 4
      %s217 = scalar_lea.vmem %s0, %s216
      %p218 = pneg %p38
      %p219 = pneg %p35
      %s220 = smul.u32 3, %s17
      %p221 = scmp.lt.s32.totalorder %s220, 5
      %s222 = scalar_select %p221, %s220, 5
      %s223 = smul.addr %s222, 2
      %s224 = smul.addr %s223, 4
      %s225 = scalar_lea.vmem %s1, %s224
      %p226 = pneg %p64
      %p227 = pneg %p61
      %p228 = pneg %p85
      %p229 = pneg %p82
      %p230 = pneg %p111
      %p231 = pneg %p108
      %p232 = scmp.lt.s32.totalorder %s17, 1
      %s233 = scalar_select %p232, %s17, 1
      %s234 = smul.addr %s233, 8
      %s235 = scalar_lea.vmem %s3, %s234
      %p236 = pneg %p137
      %p237 = pneg %p134
      %p238 = scmp.lt.s32.totalorder %s17, 1
      %s239 = scalar_select %p238, %s17, 1
      %s240 = smul.addr %s239, 8
      %s241 = scalar_lea.vmem %s4, %s240
      %p242 = pneg %p163
      %p243 = pneg %p160
      %p244 = scmp.lt.s32.totalorder %s17, 1
      %s245 = scalar_select %p244, %s17, 1
      %s246 = smul.addr %s245, 8
      %s247 = scalar_lea.vmem %s5, %s246
      %s248 = smul.u32 3, %s17
      %p249 = scmp.lt.s32.totalorder %s248, 5
      %s250 = scalar_select %p249, %s248, 5
      %s251 = smul.addr %s250, 2
      %s252 = smul.addr %s251, 4
      %s253 = scalar_lea.vmem %s0, %s252
      %s254 = smul.u32 3, %s17
      %s255 = smul.u32 3, %s17
      %p256 = scmp.lt.s32.totalorder %s255, 5
      %s257 = scalar_select %p256, %s255, 5
      %s258 = smul.addr %s257, 2
      %s259 = smul.addr %s258, 4
      %s260 = scalar_lea.vmem %s1, %s259
      %s261 = smul.u32 3, %s17
      %p262 = scmp.lt.s32.totalorder %s17, 1
      %s263 = scalar_select %p262, %s17, 1
      %s264 = smul.addr %s263, 8
      %s265 = scalar_lea.vmem %s3, %s264
      %p266 = scmp.lt.s32.totalorder %s17, 1
      %s267 = scalar_select %p266, %s17, 1
      %s268 = smul.addr %s267, 8
      %s269 = scalar_lea.vmem %s4, %s268
      %p270 = scmp.lt.s32.totalorder %s17, 1
      %s271 = scalar_select %p270, %s17, 1
      %s272 = smul.addr %s271, 8
      %s273 = scalar_lea.vmem %s5, %s272
      %v274 = vld [vmem:[%s253] sm:$0xff]
      %v275 = vld [vmem:[%s253 + $0x8] sm:$0xff]
      %v276 = vld [vmem:[%s253 + $0x10] sm:$0xff]
      %v277 = vld [vmem:[%s260] sm:$0xff]
      %v278 = vld [vmem:[%s260 + $0x8] sm:$0xff]
      %v279 = vld [vmem:[%s260 + $0x10] sm:$0xff]
      %v280 = vld [vmem:[%s2] sm:$0xff]
      %v281 = vld [vmem:[%s2 + $0x8] sm:$0xff]
      %v282 = vld [vmem:[%s2 + $0x10] sm:$0xff]
      %v283 = vld [vmem:[%s2 + $0x18] sm:$0xff]
      %v284 = vld [vmem:[%s2 + $0x20] sm:$0xff]
      %v285 = vld [vmem:[%s2 + $0x28] sm:$0xff]
      %v286 = vld [vmem:[%s2 + $0x30] sm:$0xff]
      %v287 = vld [vmem:[%s2 + $0x38] sm:$0xff]
      %v288 = vld [vmem:[%s2 + $0x40] sm:$0xff]
      %v289 = vld [vmem:[%s2 + $0x48] sm:$0xff]
      %v290 = vld [vmem:[%s2 + $0x50] sm:$0xff]
      %v291 = vld [vmem:[%s2 + $0x58] sm:$0xff]
      %v292 = vld [vmem:[%s2 + $0x60] sm:$0xff]
      %v293 = vld [vmem:[%s2 + $0x68] sm:$0xff]
      %v294 = vld [vmem:[%s2 + $0x70] sm:$0xff]
      %v295 = vld [vmem:[%s2 + $0x78] sm:$0xff]
      %v296 = vld [vmem:[%s2 + $0x80] sm:$0xff]
      %v297 = vld [vmem:[%s2 + $0x88] sm:$0xff]
      %v298 = vld [vmem:[%s2 + $0x90] sm:$0xff]
      %v299 = vld [vmem:[%s2 + $0x98] sm:$0xff]
      %v300 = vld [vmem:[%s2 + $0xa0] sm:$0xff]
      %v301 = vld [vmem:[%s2 + $0xa8] sm:$0xff]
      %v302 = vld [vmem:[%s2 + $0xb0] sm:$0xff]
      %v303 = vld [vmem:[%s2 + $0xb8] sm:$0xff]
      %v304 = vld [vmem:[%s2 + $0xc0] sm:$0xff]
      %v305 = vld [vmem:[%s2 + $0xc8] sm:$0xff]
      %v306 = vld [vmem:[%s2 + $0xd0] sm:$0xff]
      %v307 = vld [vmem:[%s2 + $0xd8] sm:$0xff]
      %v308 = vld [vmem:[%s2 + $0xe0] sm:$0xff]
      %v309 = vld [vmem:[%s2 + $0xe8] sm:$0xff]
      %v310 = vld [vmem:[%s2 + $0xf0] sm:$0xff]
      %v311 = vld [vmem:[%s2 + $0xf8] sm:$0xff]
      %v315 = vunpack.c.l.b16 %v274
      %v316 = vunpack.c.h.b16 %v274
      %v317 = vunpack.c.l.b16 %v275
      %v318 = vunpack.c.h.b16 %v275
      %v319 = vunpack.c.l.b16 %v276
      %v320 = vunpack.c.h.b16 %v276
      %v321 = vpack.c.b16 %v317, %v315
      %v322 = vpack.c.b16 %v318, %v316
      %v323 = vpack.c.b16 %v319, %v319
      %v324 = vpack.c.b16 %v320, %v320
      %v361 = vunpack.c.l.b16 %v280
      %v362 = vunpack.c.h.b16 %v280
      %v363 = vunpack.c.l.b16 %v281
      %v364 = vunpack.c.h.b16 %v281
      %v365 = vunpack.c.l.b16 %v282
      %v366 = vunpack.c.h.b16 %v282
      %v367 = vunpack.c.l.b16 %v283
      %v368 = vunpack.c.h.b16 %v283
      %v369 = vunpack.c.l.b16 %v284
      %v370 = vunpack.c.h.b16 %v284
      %v371 = vunpack.c.l.b16 %v285
      %v372 = vunpack.c.h.b16 %v285
      %v373 = vunpack.c.l.b16 %v286
      %v374 = vunpack.c.h.b16 %v286
      %v375 = vunpack.c.l.b16 %v287
      %v376 = vunpack.c.h.b16 %v287
      %v377 = vunpack.c.l.b16 %v288
      %v378 = vunpack.c.h.b16 %v288
      %v379 = vunpack.c.l.b16 %v289
      %v380 = vunpack.c.h.b16 %v289
      %v381 = vunpack.c.l.b16 %v290
      %v382 = vunpack.c.h.b16 %v290
      %v383 = vunpack.c.l.b16 %v291
      %v384 = vunpack.c.h.b16 %v291
      %v385 = vunpack.c.l.b16 %v292
      %v386 = vunpack.c.h.b16 %v292
      %v387 = vunpack.c.l.b16 %v293
      %v388 = vunpack.c.h.b16 %v293
      %v389 = vunpack.c.l.b16 %v294
      %v390 = vunpack.c.h.b16 %v294
      %v391 = vunpack.c.l.b16 %v295
      %v392 = vunpack.c.h.b16 %v295
      %v393 = vunpack.c.l.b16 %v296
      %v394 = vunpack.c.h.b16 %v296
      %v395 = vunpack.c.l.b16 %v297
      %v396 = vunpack.c.h.b16 %v297
      %v397 = vunpack.c.l.b16 %v298
      %v398 = vunpack.c.h.b16 %v298
      %v399 = vunpack.c.l.b16 %v299
      %v400 = vunpack.c.h.b16 %v299
      %v401 = vunpack.c.l.b16 %v300
      %v402 = vunpack.c.h.b16 %v300
      %v403 = vunpack.c.l.b16 %v301
      %v404 = vunpack.c.h.b16 %v301
      %v405 = vunpack.c.l.b16 %v302
      %v406 = vunpack.c.h.b16 %v302
      %v407 = vunpack.c.l.b16 %v303
      %v408 = vunpack.c.h.b16 %v303
      %v409 = vunpack.c.l.b16 %v304
      %v410 = vunpack.c.h.b16 %v304
      %v411 = vunpack.c.l.b16 %v305
      %v412 = vunpack.c.h.b16 %v305
      %v413 = vunpack.c.l.b16 %v306
      %v414 = vunpack.c.h.b16 %v306
      %v415 = vunpack.c.l.b16 %v307
      %v416 = vunpack.c.h.b16 %v307
      %v417 = vunpack.c.l.b16 %v308
      %v418 = vunpack.c.h.b16 %v308
      %v419 = vunpack.c.l.b16 %v309
      %v420 = vunpack.c.h.b16 %v309
      %v421 = vunpack.c.l.b16 %v310
      %v422 = vunpack.c.h.b16 %v310
      %v423 = vunpack.c.l.b16 %v311
      %v424 = vunpack.c.h.b16 %v311
      %v425 = vpack.c.b16 %v363, %v361
      %v426 = vpack.c.b16 %v364, %v362
      %v427 = vpack.c.b16 %v367, %v365
      %v428 = vpack.c.b16 %v368, %v366
      %v429 = vpack.c.b16 %v371, %v369
      %v430 = vpack.c.b16 %v372, %v370
      %v431 = vpack.c.b16 %v375, %v373
      %v432 = vpack.c.b16 %v376, %v374
      %v433 = vpack.c.b16 %v379, %v377
      %v434 = vpack.c.b16 %v380, %v378
      %v435 = vpack.c.b16 %v383, %v381
      %v436 = vpack.c.b16 %v384, %v382
      %v437 = vpack.c.b16 %v387, %v385
      %v438 = vpack.c.b16 %v388, %v386
      %v439 = vpack.c.b16 %v391, %v389
      %v440 = vpack.c.b16 %v392, %v390
      %v441 = vpack.c.b16 %v395, %v393
      %v442 = vpack.c.b16 %v396, %v394
      %v443 = vpack.c.b16 %v399, %v397
      %v444 = vpack.c.b16 %v400, %v398
      %v445 = vpack.c.b16 %v403, %v401
      %v446 = vpack.c.b16 %v404, %v402
      %v447 = vpack.c.b16 %v407, %v405
      %v448 = vpack.c.b16 %v408, %v406
      %v449 = vpack.c.b16 %v411, %v409
      %v450 = vpack.c.b16 %v412, %v410
      %v451 = vpack.c.b16 %v415, %v413
      %v452 = vpack.c.b16 %v416, %v414
      %v453 = vpack.c.b16 %v419, %v417
      %v454 = vpack.c.b16 %v420, %v418
      %v455 = vpack.c.b16 %v423, %v421
      %v456 = vpack.c.b16 %v424, %v422
      %489 = vmatprep.subr.bf16.mxu0 %v440
      %490 = vmatpush1.bf16.msra.mxu0 %v439
      %491 = vmatprep.subr.bf16.mxu0 %v438
      %492 = vmatpush1.bf16.msra.mxu0 %v437
      %493 = vmatprep.subr.bf16.mxu0 %v436
      %494 = vmatpush1.bf16.msra.mxu0 %v435
      %495 = vmatprep.subr.bf16.mxu0 %v434
      %496 = vmatpush1.bf16.msra.mxu0 %v433
      %497 = vmatprep.subr.bf16.mxu0 %v432
      %498 = vmatpush1.bf16.msra.mxu0 %v431
      %499 = vmatprep.subr.bf16.mxu0 %v430
      %500 = vmatpush1.bf16.msra.mxu0 %v429
      %501 = vmatprep.subr.bf16.mxu0 %v428
      %502 = vmatpush1.bf16.msra.mxu0 %v427
      %503 = vmatprep.subr.bf16.mxu0 %v426
      %504 = vmatpush1.bf16.msra.mxu0 %v425
      %505 = vmatprep.subr.bf16.mxu0 %v456
      %506 = vmatpush2.bf16.msra.mxu0 %v455
      %507 = vmatprep.subr.bf16.mxu0 %v454
      %508 = vmatpush2.bf16.msra.mxu0 %v453
      %509 = vmatprep.subr.bf16.mxu0 %v452
      %510 = vmatpush2.bf16.msra.mxu0 %v451
      %511 = vmatprep.subr.bf16.mxu0 %v450
      %512 = vmatpush2.bf16.msra.mxu0 %v449
      %513 = vmatprep.subr.bf16.mxu0 %v448
      %514 = vmatpush2.bf16.msra.mxu0 %v447
      %515 = vmatprep.subr.bf16.mxu0 %v446
      %516 = vmatpush2.bf16.msra.mxu0 %v445
      %517 = vmatprep.subr.bf16.mxu0 %v444
      %518 = vmatpush2.bf16.msra.mxu0 %v443
      %519 = vmatprep.subr.bf16.mxu0 %v442
      %520 = vmatpush2.bf16.msra.mxu0 %v441
      %521 = vmatprep.mubr.bf16.mxu0 %v322
      %522 = vmatmul.mubr.bf16.gmra.mxu0 %v321
      %v523 = vpop.f32.mrf.mxu0
      %v524 = vadd.f32 0.0, %v523
      %v525 = vpop.f32.mrf.mxu0
      %v526 = vadd.f32 0.0, %v525
      %v527 = vpop.f32.mrf.mxu0
      %v528 = vadd.f32 0.0, %v527
      %v529 = vpop.f32.mrf.mxu0
      %v530 = vadd.f32 0.0, %v529
      %531 = vmatprep.mubr.bf16.mxu0 %v324
      %532 = vmatmul.mubr.bf16.gmra.mxu0 %v323
      %v533 = vpop.f32.mrf.mxu0
      %v534 = vadd.f32 0.0, %v533
      %v535 = vpop.f32.mrf.mxu0
      %v536 = vadd.f32 0.0, %v535
      %v537 = vpop.f32.mrf.mxu0
      %v538 = vpop.f32.mrf.mxu0
      %539 = vdwg.mxu0
      %v543 = vunpack.c.l.b16 %v277
      %v544 = vunpack.c.h.b16 %v277
      %v545 = vunpack.c.l.b16 %v278
      %v546 = vunpack.c.h.b16 %v278
      %v547 = vunpack.c.l.b16 %v279
      %v548 = vunpack.c.h.b16 %v279
      %v549 = vpack.c.b16 %v545, %v543
      %v550 = vpack.c.b16 %v546, %v544
      %v551 = vpack.c.b16 %v547, %v547
      %v552 = vpack.c.b16 %v548, %v548
      %557 = vmatprep.subr.bf16.mxu0 %v440
      %558 = vmatpush1.bf16.msra.mxu0 %v439
      %559 = vmatprep.subr.bf16.mxu0 %v438
      %560 = vmatpush1.bf16.msra.mxu0 %v437
      %561 = vmatprep.subr.bf16.mxu0 %v436
      %562 = vmatpush1.bf16.msra.mxu0 %v435
      %563 = vmatprep.subr.bf16.mxu0 %v434
      %564 = vmatpush1.bf16.msra.mxu0 %v433
      %565 = vmatprep.subr.bf16.mxu0 %v432
      %566 = vmatpush1.bf16.msra.mxu0 %v431
      %567 = vmatprep.subr.bf16.mxu0 %v430
      %568 = vmatpush1.bf16.msra.mxu0 %v429
      %569 = vmatprep.subr.bf16.mxu0 %v428
      %570 = vmatpush1.bf16.msra.mxu0 %v427
      %571 = vmatprep.subr.bf16.mxu0 %v426
      %572 = vmatpush1.bf16.msra.mxu0 %v425
      %573 = vmatprep.subr.bf16.mxu0 %v456
      %574 = vmatpush2.bf16.msra.mxu0 %v455
      %575 = vmatprep.subr.bf16.mxu0 %v454
      %576 = vmatpush2.bf16.msra.mxu0 %v453
      %577 = vmatprep.subr.bf16.mxu0 %v452
      %578 = vmatpush2.bf16.msra.mxu0 %v451
      %579 = vmatprep.subr.bf16.mxu0 %v450
      %580 = vmatpush2.bf16.msra.mxu0 %v449
      %581 = vmatprep.subr.bf16.mxu0 %v448
      %582 = vmatpush2.bf16.msra.mxu0 %v447
      %583 = vmatprep.subr.bf16.mxu0 %v446
      %584 = vmatpush2.bf16.msra.mxu0 %v445
      %585 = vmatprep.subr.bf16.mxu0 %v444
      %586 = vmatpush2.bf16.msra.mxu0 %v443
      %587 = vmatprep.subr.bf16.mxu0 %v442
      %588 = vmatpush2.bf16.msra.mxu0 %v441
      %589 = vmatprep.mubr.bf16.mxu0 %v550
      %590 = vmatmul.mubr.bf16.gmra.mxu0 %v549
      %v591 = vpop.f32.mrf.mxu0
      %v592 = vadd.f32 0.0, %v591
      %v593 = vpop.f32.mrf.mxu0
      %v594 = vadd.f32 0.0, %v593
      %v595 = vpop.f32.mrf.mxu0
      %v596 = vadd.f32 0.0, %v595
      %v597 = vpop.f32.mrf.mxu0
      %v598 = vadd.f32 0.0, %v597
      %599 = vmatprep.mubr.bf16.mxu0 %v552
      %600 = vmatmul.mubr.bf16.gmra.mxu0 %v551
      %v601 = vpop.f32.mrf.mxu0
      %v602 = vadd.f32 0.0, %v601
      %v603 = vpop.f32.mrf.mxu0
      %v604 = vadd.f32 0.0, %v603
      %v605 = vpop.f32.mrf.mxu0
      %v606 = vpop.f32.mrf.mxu0
      %607 = vdwg.mxu0
      %v608 = vmul.f32 %v524, %v524
      %v609 = vmul.f32 %v526, %v526
      %v610 = vadd.f32 %v608, %v609
      %v611 = vrsqrt.pop %v610
      %v612 = vmul.f32 %v610, %v611
      %vm613 = vcmp.eq.f32.partialorder %v610, inf
      %v614 = vsel %vm613, %v610, %v612
      %vm615 = vcmp.eq.f32.partialorder %v610, 0.0
      %v616 = vand.u32 %v610, 2147483648
      %v617 = vsel %vm615, %v616, %v614
      %v618 = vmax.f32 %v617, 1e-07
      %v619 = vmul.f32 %v592, %v592
      %v620 = vmul.f32 %v594, %v594
      %v621 = vadd.f32 %v619, %v620
      %v622 = vrsqrt.pop %v621
      %v623 = vmul.f32 %v621, %v622
      %vm624 = vcmp.eq.f32.partialorder %v621, inf
      %v625 = vsel %vm624, %v621, %v623
      %vm626 = vcmp.eq.f32.partialorder %v621, 0.0
      %v627 = vand.u32 %v621, 2147483648
      %v628 = vsel %vm626, %v627, %v625
      %v629 = vmax.f32 %v628, 1e-07
      %v630 = vsub.f32 %v629, %v618
      %v631 = vlog2.pop %v629
      %v632 = vmul.f32 %v631, 0.6931472
      %v633 = vlog2.pop %v618
      %v634 = vmul.f32 %v633, 0.6931472
      %v635 = vsub.f32 %v632, %v634
      %v636 = vand.u32 2147483647, %v635
      %v637 = vadd.f32 %v636, 0.0
      %v638 = vmul.f32 %v630, %v630
      %v639 = vadd.f32 %v638, 0.0
      %v640 = vmul.f32 %v629, %v629
      %v641 = vadd.f32 %v640, 0.0
      %v642 = vmul.f32 %v528, %v528
      %v643 = vmul.f32 %v530, %v530
      %v644 = vadd.f32 %v642, %v643
      %v645 = vrsqrt.pop %v644
      %v646 = vmul.f32 %v644, %v645
      %vm647 = vcmp.eq.f32.partialorder %v644, inf
      %v648 = vsel %vm647, %v644, %v646
      %vm649 = vcmp.eq.f32.partialorder %v644, 0.0
      %v650 = vand.u32 %v644, 2147483648
      %v651 = vsel %vm649, %v650, %v648
      %v652 = vmax.f32 %v651, 1e-07
      %v653 = vmul.f32 %v596, %v596
      %v654 = vmul.f32 %v598, %v598
      %v655 = vadd.f32 %v653, %v654
      %v656 = vrsqrt.pop %v655
      %v657 = vmul.f32 %v655, %v656
      %vm658 = vcmp.eq.f32.partialorder %v655, inf
      %v659 = vsel %vm658, %v655, %v657
      %vm660 = vcmp.eq.f32.partialorder %v655, 0.0
      %v661 = vand.u32 %v655, 2147483648
      %v662 = vsel %vm660, %v661, %v659
      %v663 = vmax.f32 %v662, 1e-07
      %v664 = vsub.f32 %v663, %v652
      %v665 = vlog2.pop %v663
      %v666 = vmul.f32 %v665, 0.6931472
      %v667 = vlog2.pop %v652
      %v668 = vmul.f32 %v667, 0.6931472
      %v669 = vsub.f32 %v666, %v668
      %v670 = vand.u32 2147483647, %v669
      %v671 = vadd.f32 %v637, %v670
      %v672 = vmul.f32 %v664, %v664
      %v673 = vadd.f32 %v639, %v672
      %v674 = vmul.f32 %v663, %v663
      %v675 = vadd.f32 %v641, %v674
      %v676 = vmul.f32 %v534, %v534
      %v677 = vmul.f32 %v536, %v536
      %v678 = vadd.f32 %v676, %v677
      %v679 = vrsqrt.pop %v678
      %v680 = vmul.f32 %v678, %v679
      %vm681 = vcmp.eq.f32.partialorder %v678, inf
      %v682 = vsel %vm681, %v678, %v680
      %vm683 = vcmp.eq.f32.partialorder %v678, 0.0
      %v684 = vand.u32 %v678, 2147483648
      %v685 = vsel %vm683, %v684, %v682
      %v686 = vmax.f32 %v685, 1e-07
      %v687 = vmul.f32 %v602, %v602
      %v688 = vmul.f32 %v604, %v604
      %v689 = vadd.f32 %v687, %v688
      %v690 = vrsqrt.pop %v689
      %v691 = vmul.f32 %v689, %v690
      %vm692 = vcmp.eq.f32.partialorder %v689, inf
      %v693 = vsel %vm692, %v689, %v691
      %vm694 = vcmp.eq.f32.partialorder %v689, 0.0
      %v695 = vand.u32 %v689, 2147483648
      %v696 = vsel %vm694, %v695, %v693
      %v697 = vmax.f32 %v696, 1e-07
      %v698 = vsub.f32 %v697, %v686
      %v699 = vlog2.pop %v697
      %v700 = vmul.f32 %v699, 0.6931472
      %v701 = vlog2.pop %v686
      %v702 = vmul.f32 %v701, 0.6931472
      %v703 = vsub.f32 %v700, %v702
      %v704 = vand.u32 2147483647, %v703
      %v705 = vadd.f32 %v671, %v704
      %v706 = vmul.f32 %v698, %v698
      %v707 = vadd.f32 %v673, %v706
      %v708 = vmul.f32 %v697, %v697
      %v709 = vadd.f32 %v675, %v708
      %710 = vst [vmem:[%s265] sm:$0xff] %v705
      %711 = vst [vmem:[%s269] sm:$0xff] %v707
      %712 = vst [vmem:[%s273] sm:$0xff] %v709
      %p713 = scmp.lt.s32.totalorder %s17, 1
      %s714 = scalar_select %p713, %s17, 1
      %s715 = smul.addr %s714, 8
      %s716 = scalar_lea.vmem %s3, %s715
      %p717 = scmp.lt.s32.totalorder %s17, 1
      %s718 = scalar_select %p717, %s17, 1
      %s719 = smul.addr %s718, 8
      %s720 = scalar_lea.vmem %s4, %s719
      %p721 = scmp.lt.s32.totalorder %s17, 1
      %s722 = scalar_select %p721, %s17, 1
      %s723 = smul.addr %s722, 8
      %s724 = scalar_lea.vmem %s5, %s723
      // Predicated region
      $region33: #{_lambda_.1} parent=31 // pred_check
        %p725 = pneg %p108
      $region34: #{_lambda_.1} parent=31 // pred_check_branch
        %727 = sbr.rel (%p725) target = $region36
      $region35: #{_lambda_.1} parent=31 // pred_region
        _
      $region36: #{_lambda_.1} parent=31 // pred_fallthru
        _
      // Predicated region
      $region37: #{_lambda_.1} parent=31 // pred_check
        %p728 = pneg %p134
      $region38: #{_lambda_.1} parent=31 // pred_check_branch
        %730 = sbr.rel (%p728) target = $region40
      $region39: #{_lambda_.1} parent=31 // pred_region
        _
      $region40: #{_lambda_.1} parent=31 // pred_fallthru
        _
      // Predicated region
      $region41: #{_lambda_.1} parent=31 // pred_check
        %p731 = pneg %p160
      $region42: #{_lambda_.1} parent=31 // pred_check_branch
        %733 = sbr.rel (%p731) target = $region44
      $region43: #{_lambda_.1} parent=31 // pred_region
        _
      $region44: #{_lambda_.1} parent=31 // pred_fallthru
        _
    $region32: #{_lambda_.1} parent=5 // pred_fallthru
      _
    %p734 = scmp.le.s32.totalorder 2, %s12
    // Predicated region
    $region45: #{_lambda_.1} parent=5 // pred_check
      %p735 = pneg %p734
    $region46: #{_lambda_.1} parent=5 // pred_check_branch
      %737 = sbr.rel (%p735) target = $region48
    $region47: #{_lambda_.1} parent=5 // pred_region
      %s738 = ssub.s32 %s12, 2
      // Predicated region
      $region49: #{_lambda_.1} parent=47 // pred_check
        %p739 = pneg %p114
      $region50: #{_lambda_.1} parent=47 // pred_check_branch
        %741 = sbr.rel (%p739) target = $region52
      $region51: #{_lambda_.1} parent=47 // pred_region
        %p742 = scmp.lt.s32.totalorder %s18, 1
        %s743 = scalar_select %p742, %s18, 1
        %s744 = smul.addr %s743, 8
        %s745 = scalar_lea.vmem %s3, %s744
      $region52: #{_lambda_.1} parent=47 // pred_fallthru
        _
      // Predicated region
      $region53: #{_lambda_.1} parent=47 // pred_check
        %p746 = pneg %p140
      $region54: #{_lambda_.1} parent=47 // pred_check_branch
        %748 = sbr.rel (%p746) target = $region56
      $region55: #{_lambda_.1} parent=47 // pred_region
        %p749 = scmp.lt.s32.totalorder %s18, 1
        %s750 = scalar_select %p749, %s18, 1
        %s751 = smul.addr %s750, 8
        %s752 = scalar_lea.vmem %s4, %s751
      $region56: #{_lambda_.1} parent=47 // pred_fallthru
        _
      // Predicated region
      $region57: #{_lambda_.1} parent=47 // pred_check
        %p753 = pneg %p166
      $region58: #{_lambda_.1} parent=47 // pred_check_branch
        %755 = sbr.rel (%p753) target = $region60
      $region59: #{_lambda_.1} parent=47 // pred_region
        %p756 = scmp.lt.s32.totalorder %s18, 1
        %s757 = scalar_select %p756, %s18, 1
        %s758 = smul.addr %s757, 8
        %s759 = scalar_lea.vmem %s5, %s758
      $region60: #{_lambda_.1} parent=47 // pred_fallthru
        _
    $region48: #{_lambda_.1} parent=5 // pred_fallthru
      _
  $region6: #{_lambda_.1} parent=0 // loop_footer
    %s16 = sadd.s32 1, %s12
  $region7: #{_lambda_.1} parent=0 // loop_footer_branch
    %11 = sbr.rel target = $region3
  $region8: #{_lambda_.1} parent=0 // loop_exit
    _

</llo_original>
